<compile_context>
chip_gen: v5e
topology: v5e:2x2
jax: 0.10.0
libtpu: 0.0.40
codegen_flags: <defaults>
</compile_context>

<pallas_src>
import functools
import math

import jax
import jax.numpy as jnp
from jax.experimental import pallas as pl
from jax.experimental.pallas import tpu as pltpu


# ---------------------------------------------------------------------------
# Fused kernel: one (batch, OC-tile, spatial-col-tile) grid step.
#   s_ref    : (1, 1, IC)         modulated style  (style @ mod_w.T + mod_b)
#   wsq_ref  : (OCT, IC)          sum over taps of (scale*weight)^2  (f32)
#   w_ref    : (KK, OCT, IC)      scaled base weight, tap-major
#   x_ref    : (1, IC, Lin)       flat-padded activations (resident per batch)
#   o_ref    : (1, OCT, CT)       lane-dense output tile
#   wmat_ref : (KK, OCT, IC)      VMEM scratch: modulated/demodulated weight
# ---------------------------------------------------------------------------
def _modconv_kernel(ksize, pad, W, KK, col_tile, dmax, eps, demodulate,
                    compute_dtype,
                    s_ref, wsq_ref, w_ref, x_ref, o_ref, wmat_ref):
    t_sp = pl.program_id(2)

    # ---- modulation + algebraic demodulation: once per (batch, OC-tile) ----
    @pl.when(t_sp == 0)
    def _():
        s = s_ref[0].astype(jnp.float32)                        # (1, IC)
        wmat = w_ref[...].astype(jnp.float32) * s               # (KK, OCT, IC)
        if demodulate:
            # demod[oc] = rsqrt( sum_ic s[ic]^2 * sum_kk w0[oc,kk,ic]^2 + eps )
            denom = jnp.sum(wsq_ref[...] * (s * s), axis=1, keepdims=True)
            wmat = wmat * jax.lax.rsqrt(denom + eps)[None]      # (1, OCT, 1)
        wmat_ref[...] = wmat.astype(compute_dtype)

    # ---- conv: KK accumulated per-tap MXU matmuls for this column tile -----
    c0 = pl.multiple_of(t_sp * col_tile, col_tile)
    xwin = x_ref[0, :, pl.ds(c0, col_tile + dmax)]              # (IC, CT+dmax)

    # W-border masks: ksize distinct masks (kx only), built once per tile.
    xcol = (c0 + jax.lax.broadcasted_iota(jnp.int32, (1, col_tile), 1)) % W
    masks = {}
    for kx in range(ksize):
        lo, hi = max(0, pad - kx), min(W, W + pad - kx)
        if lo > 0 or hi < W:
            masks[kx] = (xcol >= lo) & (xcol < hi)

    acc = None
    for ky in range(ksize):
        for kx in range(ksize):
            tap = ky * ksize + kx
            off = ky * W + kx
            sl = xwin[:, off:off + col_tile]                    # (IC, CT)
            if kx in masks:
                sl = jnp.where(masks[kx], sl, jnp.zeros_like(sl))
            d = jnp.dot(wmat_ref[tap], sl,
                        preferred_element_type=jnp.float32)     # (OCT, CT)
            acc = d if acc is None else acc + d
    o_ref[0] = acc.astype(o_ref.dtype)


# ---------------------------------------------------------------------------
# Tiling / VMEM heuristics
# ---------------------------------------------------------------------------
def _pick_col_tile(L_out, W):
    # Prefer large, lane-dense, whole-output-row tiles (multiple of 128 & W).
    cands = [t for t in (1024, 512, 256, 2048, 128) if L_out % t == 0]
    if not cands:
        return L_out                       # single-tile fallback (tiny maps)
    row_cands = [t for t in cands if t % W == 0]
    return (row_cands or cands)[0]


def _default_vmem_limit():
    cap = 128 * 1024 * 1024
    try:
        cap = int(getattr(pltpu.get_tpu_info(), "vmem_capacity_bytes", cap))
    except Exception:
        pass
    if cap <= 64 * 1024 * 1024:            # v7x: 64 MiB per TC -> headroom
        return 52 * 1024 * 1024
    return 100 * 1024 * 1024               # v5e / v6e: 128 MiB physical


# ---------------------------------------------------------------------------
# Wrapper (glue: padding, parameter re-layout, pallas_call plumbing)
# ---------------------------------------------------------------------------
def modulated_conv2d(x, style, weight, mod_w, mod_b, *, demodulate=True,
                     oc_tile=None, col_tile=None,
                     compute_dtype=jnp.bfloat16, out_dtype=jnp.float32):
    """x: (B, IC, H, W) NCHW; style: (B, 512); weight: (1, OC, IC, k, k)."""
    B, IC, H, W = x.shape
    _, OC, _, ksize, _ = weight.shape
    assert ksize % 2 == 1, "only odd kernel sizes (SAME padding) supported"
    pad = ksize // 2
    KK = ksize * ksize
    scale = 1.0 / math.sqrt(IC * ksize ** 2)
    eps = 1e-8
    L_out = H * W
    dmax = (ksize - 1) * W + 2 * pad        # largest im2col lane shift
    Lin = L_out + dmax

    # ---- tiling choices -----------------------------------------------------
    if oc_tile is None:
        oc_tile = 256 if OC % 256 == 0 else (128 if OC % 128 == 0 else OC)
    assert OC % oc_tile == 0, (OC, oc_tile)
    if col_tile is None:
        col_tile = _pick_col_tile(L_out, W)
    assert L_out % col_tile == 0, (L_out, col_tile)
    assert col_tile % 128 == 0 or col_tile == L_out, col_tile
    n_tiles = L_out // col_tile

    # ---- style modulation: one batched dot in the wrapper -------------------
    s = (style.astype(jnp.float32) @ mod_w.T.astype(jnp.float32)
         + mod_b.astype(jnp.float32)).reshape(B, 1, IC)

    # ---- parameter re-layouts (tiny, parameter-only) ------------------------
    # Tap-major (KK, OC, IC) with tap = ky*ksize + kx; `scale` folded in.
    w_kk = (scale * jnp.transpose(weight[0], (2, 3, 0, 1))
            ).reshape(KK, OC, IC).astype(jnp.float32)
    wsq = jnp.sum(w_kk ** 2, axis=0)                 # (OC, IC), for demod
    w_base = w_kk.astype(compute_dtype)              # bf16 unless overridden

    # ---- activations: H pad + flat pad + cast collapsed into one jnp.pad ----
    xflat = jnp.pad(x.astype(compute_dtype).reshape(B, IC, L_out),
                    ((0, 0), (0, 0), (pad * W + pad, pad * W + pad)))
    assert xflat.shape[-1] == Lin

    kernel = functools.partial(
        _modconv_kernel, ksize, pad, W, KK, col_tile, dmax, eps, demodulate,
        compute_dtype)

    out_flat = pl.pallas_call(
        kernel,
        out_shape=jax.ShapeDtypeStruct((B, OC, L_out), out_dtype),
        grid=(B, OC // oc_tile, n_tiles),
        in_specs=[
            pl.BlockSpec((1, 1, IC), lambda b, j, t: (b, 0, 0)),         # style s
            pl.BlockSpec((oc_tile, IC), lambda b, j, t: (j, 0)),         # sum_kk w^2
            pl.BlockSpec((KK, oc_tile, IC), lambda b, j, t: (0, j, 0)),  # base weight
            pl.BlockSpec((1, IC, Lin), lambda b, j, t: (b, 0, 0)),       # activations
        ],
        out_specs=pl.BlockSpec((1, oc_tile, col_tile),
                               lambda b, j, t: (b, j, t)),
        scratch_shapes=[pltpu.VMEM((KK, oc_tile, IC), compute_dtype)],
        compiler_params=pltpu.CompilerParams(
            dimension_semantics=("parallel", "parallel", "arbitrary"),
            vmem_limit_bytes=_default_vmem_limit()),
    )(s, wsq, w_base, xflat)

    return out_flat.reshape(B, OC, H, W)


# ---------------------------------------------------------------------------
# Pure-JAX reference (mirrors the PyTorch forward) for correctness checks.
# ---------------------------------------------------------------------------
def reference_modulated_conv2d(x, style, weight, mod_w, mod_b):
    B, IC, H, W = x.shape
    _, OC, _, ksize, _ = weight.shape
    pad = ksize // 2
    scale = 1.0 / math.sqrt(IC * ksize ** 2)
    s = style @ mod_w.T + mod_b                                    # (B, IC)
    w = scale * weight * s[:, None, :, None, None]                 # (B, OC, IC, k, k)
    demod = jax.lax.rsqrt(jnp.sum(w ** 2, axis=(2, 3, 4)) + 1e-08)  # (B, OC)
    w = w * demod[:, :, None, None, None]
    outs = []
    for b in range(B):
        o = jax.lax.conv_general_dilated(
            x[b:b + 1], w[b], window_strides=(1, 1),
            padding=[(pad, pad), (pad, pad)],
            dimension_numbers=("NCHW", "OIHW", "NCHW"))
        outs.append(o)
    return jnp.concatenate(outs, axis=0)


if __name__ == "__main__":
    B, IC, OC, K, H, W, STYLE_DIM = 2, 4, 8, 3, 16, 16, 512

    key = jax.random.PRNGKey(0)
    kx, ks, kw, kmw, kmb = jax.random.split(key, 5)

    x = jax.random.normal(kx, (B, IC, H, W), dtype=jnp.float32)
    style = jax.random.normal(ks, (B, STYLE_DIM), dtype=jnp.float32)
    # Parameters (deterministic synthetic init, shapes from __init__):
    weight = jax.random.normal(kw, (1, OC, IC, K, K), dtype=jnp.float32)
    mod_w = jax.random.normal(kmw, (IC, STYLE_DIM), dtype=jnp.float32) * 0.02
    mod_b = jax.random.normal(kmb, (IC,), dtype=jnp.float32) * 0.1

    ref = reference_modulated_conv2d(x, style, weight, mod_w, mod_b)

    # Production-style path: bf16 MXU inputs, multi-tile spatial grid axis.
    out = modulated_conv2d(x, style, weight, mod_w, mod_b, col_tile=128)
    out = jax.block_until_ready(out)
    assert out.shape == (B, OC, H, W), out.shape
    err_bf16 = float(jnp.max(jnp.abs(out - ref)))
    # bf16 weights/activations (f32 accumulation) -> loosened tolerance.
    assert jnp.allclose(out, ref, rtol=5e-2, atol=1.5e-1), err_bf16

    # Full-precision path (default col_tile heuristic) against tight tolerance.
    out32 = modulated_conv2d(x, style, weight, mod_w, mod_b,
                             compute_dtype=jnp.float32)
    out32 = jax.block_until_ready(out32)
    err_f32 = float(jnp.max(jnp.abs(out32 - ref)))
    assert jnp.allclose(out32, ref, rtol=2e-3, atol=2e-3), err_f32

    print("KERNEL_OK")
</pallas_src>

<mosaic_0001>
module attributes {stable_mosaic.version = 11 : i64} {
  func.func @_modconv_kernel(%arg0: i32, %arg1: i32, %arg2: i32, %arg3: memref<1x1x4xf32, #tpu.memory_space<vmem>>, %arg4: memref<8x4xf32, #tpu.memory_space<vmem>>, %arg5: memref<9x8x4xbf16, #tpu.memory_space<vmem>>, %arg6: memref<1x4x290xbf16, #tpu.memory_space<vmem>>, %arg7: memref<1x8x128xf32, #tpu.memory_space<vmem>>, %arg8: memref<9x8x4xbf16, #tpu.memory_space<vmem>>) attributes {dimension_semantics = [#tpu.dimension_semantics<parallel>, #tpu.dimension_semantics<parallel>, #tpu.dimension_semantics<arbitrary>], iteration_bounds = array<i64: 2, 1, 2>, scalar_prefetch = 0 : i64, scratch_operands = 1 : i64, tpu.core_type = #tpu.core_type<tc>, window_params = [{transform_indices = @transform_0, window_bounds = array<i64: 1, 1, 4>}, {transform_indices = @transform_1, window_bounds = array<i64: 8, 4>}, {transform_indices = @transform_2, window_bounds = array<i64: 9, 8, 4>}, {transform_indices = @transform_3, window_bounds = array<i64: 1, 4, 290>}, {transform_indices = @transform_4, window_bounds = array<i64: 1, 8, 128>}]} {
    %c0_i32 = arith.constant 0 : i32
    %0 = arith.cmpi eq, %arg2, %c0_i32 : i32
    %1 = arith.extui %0 : i1 to i32
    %c0_i32_0 = arith.constant 0 : i32
    %2 = arith.cmpi ne, %1, %c0_i32_0 : i32
    scf.if %2 {
      %c0_45 = arith.constant 0 : index
      %c0_46 = arith.constant 0 : index
      %c0_47 = arith.constant 0 : index
      %108 = vector.load %arg3[%c0_45, %c0_46, %c0_47] : memref<1x1x4xf32, #tpu.memory_space<vmem>>, vector<1x1x4xf32>
      %109 = vector.shape_cast %108 : vector<1x1x4xf32> to vector<1x4xf32>
      %c0_48 = arith.constant 0 : index
      %c0_49 = arith.constant 0 : index
      %c0_50 = arith.constant 0 : index
      %110 = vector.load %arg5[%c0_48, %c0_49, %c0_50] : memref<9x8x4xbf16, #tpu.memory_space<vmem>>, vector<9x8x4xbf16>
      %111 = arith.extf %110 : vector<9x8x4xbf16> to vector<9x8x4xf32>
      %112 = vector.shape_cast %109 : vector<1x4xf32> to vector<1x1x4xf32>
      %113 = vector.broadcast %112 : vector<1x1x4xf32> to vector<9x8x4xf32>
      %114 = arith.mulf %111, %113 : vector<9x8x4xf32>
      %c0_51 = arith.constant 0 : index
      %c0_52 = arith.constant 0 : index
      %115 = vector.load %arg4[%c0_51, %c0_52] : memref<8x4xf32, #tpu.memory_space<vmem>>, vector<8x4xf32>
      %116 = arith.mulf %109, %109 : vector<1x4xf32>
      %117 = vector.broadcast %116 : vector<1x4xf32> to vector<8x4xf32>
      %118 = arith.mulf %115, %117 : vector<8x4xf32>
      %cst_53 = arith.constant dense<0.000000e+00> : vector<8xf32>
      %119 = vector.multi_reduction <add>, %118, %cst_53 [1] : vector<8x4xf32> to vector<8xf32>
      %120 = vector.shape_cast %119 : vector<8xf32> to vector<8x1xf32>
      %cst_54 = arith.constant 9.99999993E-9 : f32
      %121 = vector.broadcast %cst_54 : f32 to vector<8x1xf32>
      %122 = arith.addf %120, %121 : vector<8x1xf32>
      %123 = math.rsqrt %122 : vector<8x1xf32>
      %124 = vector.shape_cast %123 : vector<8x1xf32> to vector<1x8x1xf32>
      %125 = vector.broadcast %124 : vector<1x8x1xf32> to vector<9x8x4xf32>
      %126 = arith.mulf %114, %125 : vector<9x8x4xf32>
      %127 = arith.truncf %126 : vector<9x8x4xf32> to vector<9x8x4xbf16>
      %c0_55 = arith.constant 0 : index
      %c0_56 = arith.constant 0 : index
      %c0_57 = arith.constant 0 : index
      %128 = vector.load %arg8[%c0_55, %c0_56, %c0_57] : memref<9x8x4xbf16, #tpu.memory_space<vmem>>, vector<9x8x4xbf16>
      tpu.vector_store %arg8[%c0_55, %c0_56, %c0_57], %127 {strides = array<i32>} : memref<9x8x4xbf16, #tpu.memory_space<vmem>>, vector<9x8x4xbf16>,
    } else {
    }
    %c128_i32 = arith.constant 128 : i32
    %3 = arith.muli %arg2, %c128_i32 : i32
    %4 = tpu.assume_multiple %3, 128 : i32
    %c0 = arith.constant 0 : index
    %c0_1 = arith.constant 0 : index
    %5 = arith.index_cast %4 : i32 to index
    %6 = vector.load %arg6[%c0, %c0_1, %5] : memref<1x4x290xbf16, #tpu.memory_space<vmem>>, vector<1x4x162xbf16>
    %7 = vector.shape_cast %6 : vector<1x4x162xbf16> to vector<4x162xbf16>
    %8 = tpu.iota {dimensions = array<i32: 1>} : vector<1x128xi32>
    %9 = vector.broadcast %4 : i32 to vector<1x128xi32>
    %10 = arith.addi %9, %8 : vector<1x128xi32>
    %c16_i32 = arith.constant 16 : i32
    %c0_i32_2 = arith.constant 0 : i32
    %11 = arith.cmpi eq, %c16_i32, %c0_i32_2 : i32
    %c1_i32 = arith.constant 1 : i32
    %12 = arith.select %11, %c1_i32, %c16_i32 : i32
    %13 = vector.broadcast %12 : i32 to vector<1x128xi32>
    %14 = arith.remsi %10, %13 : vector<1x128xi32>
    %c0_i32_3 = arith.constant 0 : i32
    %15 = vector.broadcast %c0_i32_3 : i32 to vector<1x128xi32>
    %16 = arith.cmpi ne, %14, %15 : vector<1x128xi32>
    %c0_i32_4 = arith.constant 0 : i32
    %17 = vector.broadcast %c0_i32_4 : i32 to vector<1x128xi32>
    %18 = arith.cmpi slt, %14, %17 : vector<1x128xi32>
    %c0_i32_5 = arith.constant 0 : i32
    %19 = arith.cmpi slt, %12, %c0_i32_5 : i32
    %20 = vector.broadcast %19 : i1 to vector<1x128xi1>
    %21 = vector.broadcast %20 : vector<1x128xi1> to vector<1x128xi1>
    %22 = arith.xori %18, %21 : vector<1x128xi1>
    %23 = arith.andi %22, %16 : vector<1x128xi1>
    %24 = vector.broadcast %12 : i32 to vector<1x128xi32>
    %25 = arith.addi %14, %24 : vector<1x128xi32>
    %26 = arith.select %23, %25, %14 : vector<1x128xi1>, vector<1x128xi32>
    %c1_i32_6 = arith.constant 1 : i32
    %27 = vector.broadcast %c1_i32_6 : i32 to vector<1x128xi32>
    %28 = arith.cmpi sge, %26, %27 : vector<1x128xi32>
    %c16_i32_7 = arith.constant 16 : i32
    %29 = vector.broadcast %c16_i32_7 : i32 to vector<1x128xi32>
    %30 = arith.cmpi slt, %26, %29 : vector<1x128xi32>
    %31 = arith.andi %28, %30 : vector<1x128xi1>
    %c0_i32_8 = arith.constant 0 : i32
    %32 = vector.broadcast %c0_i32_8 : i32 to vector<1x128xi32>
    %33 = arith.cmpi sge, %26, %32 : vector<1x128xi32>
    %c15_i32 = arith.constant 15 : i32
    %34 = vector.broadcast %c15_i32 : i32 to vector<1x128xi32>
    %35 = arith.cmpi slt, %26, %34 : vector<1x128xi32>
    %36 = arith.andi %33, %35 : vector<1x128xi1>
    %37 = vector.extract_strided_slice %7 {offsets = [0, 0], sizes = [4, 128], strides = [1, 1]} : vector<4x162xbf16> to vector<4x128xbf16>
    %cst = arith.constant 0.000000e+00 : bf16
    %38 = vector.broadcast %cst : bf16 to vector<4x128xbf16>
    %39 = vector.shape_cast %31 : vector<1x128xi1> to vector<1x128xi1>
    %40 = vector.broadcast %39 : vector<1x128xi1> to vector<4x128xi1>
    %41 = arith.select %40, %37, %38 : vector<4x128xi1>, vector<4x128xbf16>
    %c0_9 = arith.constant 0 : index
    %c0_10 = arith.constant 0 : index
    %c0_11 = arith.constant 0 : index
    %42 = vector.load %arg8[%c0_9, %c0_10, %c0_11] : memref<9x8x4xbf16, #tpu.memory_space<vmem>>, vector<1x8x4xbf16>
    %43 = vector.shape_cast %42 : vector<1x8x4xbf16> to vector<8x4xbf16>
    %cst_12 = arith.constant dense<0.000000e+00> : vector<8x128xf32>
    %44 = tpu.matmul %43, %41, %cst_12 {dimension_numbers = #tpu.dot_dimension_numbers<[1], [0], [0], [1], [0, 0, 1, 1], [], []>} : vector<8x4xbf16>, vector<4x128xbf16>, vector<8x128xf32> -> vector<8x128xf32>
    %45 = vector.extract_strided_slice %7 {offsets = [0, 1], sizes = [4, 128], strides = [1, 1]} : vector<4x162xbf16> to vector<4x128xbf16>
    %c1 = arith.constant 1 : index
    %c0_13 = arith.constant 0 : index
    %c0_14 = arith.constant 0 : index
    %46 = vector.load %arg8[%c1, %c0_13, %c0_14] : memref<9x8x4xbf16, #tpu.memory_space<vmem>>, vector<1x8x4xbf16>
    %47 = vector.shape_cast %46 : vector<1x8x4xbf16> to vector<8x4xbf16>
    %cst_15 = arith.constant dense<0.000000e+00> : vector<8x128xf32>
    %48 = tpu.matmul %47, %45, %cst_15 {dimension_numbers = #tpu.dot_dimension_numbers<[1], [0], [0], [1], [0, 0, 1, 1], [], []>} : vector<8x4xbf16>, vector<4x128xbf16>, vector<8x128xf32> -> vector<8x128xf32>
    %49 = arith.addf %44, %48 : vector<8x128xf32>
    %50 = vector.extract_strided_slice %7 {offsets = [0, 2], sizes = [4, 128], strides = [1, 1]} : vector<4x162xbf16> to vector<4x128xbf16>
    %cst_16 = arith.constant 0.000000e+00 : bf16
    %51 = vector.broadcast %cst_16 : bf16 to vector<4x128xbf16>
    %52 = vector.shape_cast %36 : vector<1x128xi1> to vector<1x128xi1>
    %53 = vector.broadcast %52 : vector<1x128xi1> to vector<4x128xi1>
    %54 = arith.select %53, %50, %51 : vector<4x128xi1>, vector<4x128xbf16>
    %c2 = arith.constant 2 : index
    %c0_17 = arith.constant 0 : index
    %c0_18 = arith.constant 0 : index
    %55 = vector.load %arg8[%c2, %c0_17, %c0_18] : memref<9x8x4xbf16, #tpu.memory_space<vmem>>, vector<1x8x4xbf16>
    %56 = vector.shape_cast %55 : vector<1x8x4xbf16> to vector<8x4xbf16>
    %cst_19 = arith.constant dense<0.000000e+00> : vector<8x128xf32>
    %57 = tpu.matmul %56, %54, %cst_19 {dimension_numbers = #tpu.dot_dimension_numbers<[1], [0], [0], [1], [0, 0, 1, 1], [], []>} : vector<8x4xbf16>, vector<4x128xbf16>, vector<8x128xf32> -> vector<8x128xf32>
    %58 = arith.addf %49, %57 : vector<8x128xf32>
    %59 = vector.extract_strided_slice %7 {offsets = [0, 16], sizes = [4, 128], strides = [1, 1]} : vector<4x162xbf16> to vector<4x128xbf16>
    %cst_20 = arith.constant 0.000000e+00 : bf16
    %60 = vector.broadcast %cst_20 : bf16 to vector<4x128xbf16>
    %61 = vector.shape_cast %31 : vector<1x128xi1> to vector<1x128xi1>
    %62 = vector.broadcast %61 : vector<1x128xi1> to vector<4x128xi1>
    %63 = arith.select %62, %59, %60 : vector<4x128xi1>, vector<4x128xbf16>
    %c3 = arith.constant 3 : index
    %c0_21 = arith.constant 0 : index
    %c0_22 = arith.constant 0 : index
    %64 = vector.load %arg8[%c3, %c0_21, %c0_22] : memref<9x8x4xbf16, #tpu.memory_space<vmem>>, vector<1x8x4xbf16>
    %65 = vector.shape_cast %64 : vector<1x8x4xbf16> to vector<8x4xbf16>
    %cst_23 = arith.constant dense<0.000000e+00> : vector<8x128xf32>
    %66 = tpu.matmul %65, %63, %cst_23 {dimension_numbers = #tpu.dot_dimension_numbers<[1], [0], [0], [1], [0, 0, 1, 1], [], []>} : vector<8x4xbf16>, vector<4x128xbf16>, vector<8x128xf32> -> vector<8x128xf32>
    %67 = arith.addf %58, %66 : vector<8x128xf32>
    %68 = vector.extract_strided_slice %7 {offsets = [0, 17], sizes = [4, 128], strides = [1, 1]} : vector<4x162xbf16> to vector<4x128xbf16>
    %c4 = arith.constant 4 : index
    %c0_24 = arith.constant 0 : index
    %c0_25 = arith.constant 0 : index
    %69 = vector.load %arg8[%c4, %c0_24, %c0_25] : memref<9x8x4xbf16, #tpu.memory_space<vmem>>, vector<1x8x4xbf16>
    %70 = vector.shape_cast %69 : vector<1x8x4xbf16> to vector<8x4xbf16>
    %cst_26 = arith.constant dense<0.000000e+00> : vector<8x128xf32>
    %71 = tpu.matmul %70, %68, %cst_26 {dimension_numbers = #tpu.dot_dimension_numbers<[1], [0], [0], [1], [0, 0, 1, 1], [], []>} : vector<8x4xbf16>, vector<4x128xbf16>, vector<8x128xf32> -> vector<8x128xf32>
    %72 = arith.addf %67, %71 : vector<8x128xf32>
    %73 = vector.extract_strided_slice %7 {offsets = [0, 18], sizes = [4, 128], strides = [1, 1]} : vector<4x162xbf16> to vector<4x128xbf16>
    %cst_27 = arith.constant 0.000000e+00 : bf16
    %74 = vector.broadcast %cst_27 : bf16 to vector<4x128xbf16>
    %75 = vector.shape_cast %36 : vector<1x128xi1> to vector<1x128xi1>
    %76 = vector.broadcast %75 : vector<1x128xi1> to vector<4x128xi1>
    %77 = arith.select %76, %73, %74 : vector<4x128xi1>, vector<4x128xbf16>
    %c5 = arith.constant 5 : index
    %c0_28 = arith.constant 0 : index
    %c0_29 = arith.constant 0 : index
    %78 = vector.load %arg8[%c5, %c0_28, %c0_29] : memref<9x8x4xbf16, #tpu.memory_space<vmem>>, vector<1x8x4xbf16>
    %79 = vector.shape_cast %78 : vector<1x8x4xbf16> to vector<8x4xbf16>
    %cst_30 = arith.constant dense<0.000000e+00> : vector<8x128xf32>
    %80 = tpu.matmul %79, %77, %cst_30 {dimension_numbers = #tpu.dot_dimension_numbers<[1], [0], [0], [1], [0, 0, 1, 1], [], []>} : vector<8x4xbf16>, vector<4x128xbf16>, vector<8x128xf32> -> vector<8x128xf32>
    %81 = arith.addf %72, %80 : vector<8x128xf32>
    %82 = vector.extract_strided_slice %7 {offsets = [0, 32], sizes = [4, 128], strides = [1, 1]} : vector<4x162xbf16> to vector<4x128xbf16>
    %cst_31 = arith.constant 0.000000e+00 : bf16
    %83 = vector.broadcast %cst_31 : bf16 to vector<4x128xbf16>
    %84 = vector.shape_cast %31 : vector<1x128xi1> to vector<1x128xi1>
    %85 = vector.broadcast %84 : vector<1x128xi1> to vector<4x128xi1>
    %86 = arith.select %85, %82, %83 : vector<4x128xi1>, vector<4x128xbf16>
    %c6 = arith.constant 6 : index
    %c0_32 = arith.constant 0 : index
    %c0_33 = arith.constant 0 : index
    %87 = vector.load %arg8[%c6, %c0_32, %c0_33] : memref<9x8x4xbf16, #tpu.memory_space<vmem>>, vector<1x8x4xbf16>
    %88 = vector.shape_cast %87 : vector<1x8x4xbf16> to vector<8x4xbf16>
    %cst_34 = arith.constant dense<0.000000e+00> : vector<8x128xf32>
    %89 = tpu.matmul %88, %86, %cst_34 {dimension_numbers = #tpu.dot_dimension_numbers<[1], [0], [0], [1], [0, 0, 1, 1], [], []>} : vector<8x4xbf16>, vector<4x128xbf16>, vector<8x128xf32> -> vector<8x128xf32>
    %90 = arith.addf %81, %89 : vector<8x128xf32>
    %91 = vector.extract_strided_slice %7 {offsets = [0, 33], sizes = [4, 128], strides = [1, 1]} : vector<4x162xbf16> to vector<4x128xbf16>
    %c7 = arith.constant 7 : index
    %c0_35 = arith.constant 0 : index
    %c0_36 = arith.constant 0 : index
    %92 = vector.load %arg8[%c7, %c0_35, %c0_36] : memref<9x8x4xbf16, #tpu.memory_space<vmem>>, vector<1x8x4xbf16>
    %93 = vector.shape_cast %92 : vector<1x8x4xbf16> to vector<8x4xbf16>
    %cst_37 = arith.constant dense<0.000000e+00> : vector<8x128xf32>
    %94 = tpu.matmul %93, %91, %cst_37 {dimension_numbers = #tpu.dot_dimension_numbers<[1], [0], [0], [1], [0, 0, 1, 1], [], []>} : vector<8x4xbf16>, vector<4x128xbf16>, vector<8x128xf32> -> vector<8x128xf32>
    %95 = arith.addf %90, %94 : vector<8x128xf32>
    %96 = vector.extract_strided_slice %7 {offsets = [0, 34], sizes = [4, 128], strides = [1, 1]} : vector<4x162xbf16> to vector<4x128xbf16>
    %cst_38 = arith.constant 0.000000e+00 : bf16
    %97 = vector.broadcast %cst_38 : bf16 to vector<4x128xbf16>
    %98 = vector.shape_cast %36 : vector<1x128xi1> to vector<1x128xi1>
    %99 = vector.broadcast %98 : vector<1x128xi1> to vector<4x128xi1>
    %100 = arith.select %99, %96, %97 : vector<4x128xi1>, vector<4x128xbf16>
    %c8 = arith.constant 8 : index
    %c0_39 = arith.constant 0 : index
    %c0_40 = arith.constant 0 : index
    %101 = vector.load %arg8[%c8, %c0_39, %c0_40] : memref<9x8x4xbf16, #tpu.memory_space<vmem>>, vector<1x8x4xbf16>
    %102 = vector.shape_cast %101 : vector<1x8x4xbf16> to vector<8x4xbf16>
    %cst_41 = arith.constant dense<0.000000e+00> : vector<8x128xf32>
    %103 = tpu.matmul %102, %100, %cst_41 {dimension_numbers = #tpu.dot_dimension_numbers<[1], [0], [0], [1], [0, 0, 1, 1], [], []>} : vector<8x4xbf16>, vector<4x128xbf16>, vector<8x128xf32> -> vector<8x128xf32>
    %104 = arith.addf %95, %103 : vector<8x128xf32>
    %c0_42 = arith.constant 0 : index
    %c0_43 = arith.constant 0 : index
    %c0_44 = arith.constant 0 : index
    %105 = vector.load %arg7[%c0_42, %c0_43, %c0_44] : memref<1x8x128xf32, #tpu.memory_space<vmem>>, vector<1x8x128xf32>
    %106 = vector.shape_cast %105 : vector<1x8x128xf32> to vector<8x128xf32>
    %107 = vector.shape_cast %104 : vector<8x128xf32> to vector<1x8x128xf32>
    tpu.vector_store %arg7[%c0_42, %c0_43, %c0_44], %107 {strides = array<i32>} : memref<1x8x128xf32, #tpu.memory_space<vmem>>, vector<1x8x128xf32>,
    return
  }
  func.func @transform_0(%arg0: i32, %arg1: i32, %arg2: i32) -> (i32, i32, i32) {
    %c0_i32 = arith.constant 0 : i32
    %c0_i32_0 = arith.constant 0 : i32
    %c0_i32_1 = arith.constant 0 : i32
    return %arg0, %c0_i32, %c0_i32_0 : i32, i32, i32
  }
  func.func @transform_1(%arg0: i32, %arg1: i32, %arg2: i32) -> (i32, i32) {
    %c0_i32 = arith.constant 0 : i32
    %c0_i32_0 = arith.constant 0 : i32
    return %arg1, %c0_i32 : i32, i32
  }
  func.func @transform_2(%arg0: i32, %arg1: i32, %arg2: i32) -> (i32, i32, i32) {
    %c0_i32 = arith.constant 0 : i32
    %c0_i32_0 = arith.constant 0 : i32
    %c0_i32_1 = arith.constant 0 : i32
    return %c0_i32, %arg1, %c0_i32_0 : i32, i32, i32
  }
  func.func @transform_3(%arg0: i32, %arg1: i32, %arg2: i32) -> (i32, i32, i32) {
    %c0_i32 = arith.constant 0 : i32
    %c0_i32_0 = arith.constant 0 : i32
    %c0_i32_1 = arith.constant 0 : i32
    return %arg0, %c0_i32, %c0_i32_0 : i32, i32, i32
  }
  func.func @transform_4(%arg0: i32, %arg1: i32, %arg2: i32) -> (i32, i32, i32) {
    %c0_i32 = arith.constant 0 : i32
    return %arg0, %arg1, %arg2 : i32, i32, i32
  }
}

</mosaic_0001>

<llo_original>
// kernel: tpu_custom_call.1
$region0: #{tpu_custom_call.1}
  #allocation0 [shape = 'u32[]', space=smem, size = 0x4, offset = 0x4, fixed_abs, tag = 'smem constant byte address 0x4 - core index']
  #allocation1 [shape = 'u32[72,128]{1,0:T(1,128)}', space=vmem, size = 0x9000, scoped, tag = 'internal scratch']
  #allocation2 [shape = 'bf16[9,8,4]{2,1,0:T(8,128)(2,1)}', space=vmem, size = 0x4800, scoped, tag = 'scratch operand']
  %s0 = inlined_call_operand.vmem [shape: f32[2,1,4], index: 0, kind: input, shape index: {}]
  %s1 = inlined_call_operand.vmem [shape: f32[8,4], index: 1, kind: input, shape index: {}]
  %s2 = inlined_call_operand.vmem [shape: bf16[9,8,4], index: 2, kind: input, shape index: {}]
  %s3 = inlined_call_operand.vmem [shape: bf16[2,4,290], index: 3, kind: input, shape index: {}]
  %s4 = inlined_call_operand.hbm [shape: f32[2,8,256], index: 4, kind: output, shape index: {}]
  %s5 = sld [smem:[#allocation0]]
  $region53: #{tpu_custom_call.1} parent=0
    _
  %s7 = ssub.s32 1, %s5
  %s8 = scalar_select 0, %s7, %s5
  $region1: #{tpu_custom_call.1} parent=0
    #allocation3 [shape = 'u8[8192]{0}', space=vmem, size = 0x2000, scoped, tag = 'output window, operand 0']
    #allocation4 [shape = 's32[2]{0}', space=sflag, size = 0x8, scoped, tag = 'scoped memory for tpu_custom_call.1']
    %9 = vsyncpa [#allocation4], 0
    %s10 = scalar_lea.sflag [#allocation4], 1
    %11 = vsyncpa %s10, 0
    loop: start=0, step=1, limit=6
    $region2: #{tpu_custom_call.1} parent=1 // loop_pre_header
      _
    $region3: #{tpu_custom_call.1} parent=1 // loop_header
      %s13 = sphi 0, %s17
      %p14 = scmp.ge.s32.totalorder %s13, 6
      %s20 = sphi 0, %s39
      %s21 = sphi 0, %s35
      %s22 = sphi 0, %s31
      %s23 = sphi 0, %s20
      %s24 = sphi 0, %s21
      %s25 = sphi 0, %s22
      %s26 = sphi 0, %s23
      %s27 = sphi 0, %s24
      %s28 = sphi 0, %s25
      %s42 = sphi 0, %s44
      %s45 = sphi 0, %s42
      %s46 = sphi 0, %s45
      %s62 = sphi 0, %s46
      %s68 = sphi 0, %s70
      %s71 = sphi 0, %s68
      %s72 = sphi 0, %s71
      %s88 = sphi 0, %s72
      %s94 = sphi 0, %s96
      %s97 = sphi 0, %s94
      %s98 = sphi 0, %s97
      %s114 = sphi 0, %s98
      %s120 = sphi 0, %s122
      %s123 = sphi 0, %s120
      %s124 = sphi 0, %s123
      %s140 = sphi 0, %s124
      %s150 = sphi 0, %s152
      %s153 = sphi 0, %s150
      %s154 = sphi 0, %s153
      %s170 = sphi 0, %s154
    $region4: #{tpu_custom_call.1} parent=1 // loop_header_branch
      %16 = sbr.rel (%p14) target = $region8
    $region5: #{tpu_custom_call.1} parent=1 // loop_body
      %s18 = ssub.s32 %s13, 1
      %s19 = ssub.s32 %s13, 2
      %s29 = sadd.s32 1, %s22
      %p30 = scmp.ge.s32.totalorder %s29, 2
      %s31 = scalar_select %p30, 0, %s29
      %s32 = sadd.s32 1, %s21
      %s33 = scalar_select %p30, %s32, %s21
      %p34 = scmp.ge.s32.totalorder %s33, 1
      %s35 = scalar_select %p34, 0, %s33
      %s36 = sadd.s32 1, %s20
      %s37 = scalar_select %p34, %s36, %s20
      %p38 = scmp.ge.s32.totalorder %s37, 2
      %s39 = scalar_select %p38, 0, %s37
      %s40 = ssub.s32 %s20, %s39
      %p41 = scmp.eq.s32.totalorder %s40, 0
      %s43 = sadd.s32 %s42, 1
      %s44 = scalar_select %p41, %s42, %s43
      %p47 = pneg %p41
      %p48 = scmp.eq.s32.totalorder %s13, 3
      %p49 = por %p47, %p48
      %p50 = scmp.ne.s32.totalorder %s42, %s45
      %p51 = scmp.eq.s32.totalorder %s13, 0
      %p52 = por %p50, %p51
      %p53 = scmp.ne.s32.totalorder %s42, %s45
      %p54 = scmp.eq.s32.totalorder %s18, 3
      %p55 = por %p53, %p54
      %p56 = scmp.ne.s32.totalorder %s45, %s46
      %p57 = scmp.eq.s32.totalorder %s18, 0
      %p58 = por %p56, %p57
      %p59 = scmp.ne.s32.totalorder %s45, %s46
      %p60 = scmp.eq.s32.totalorder %s19, 3
      %p61 = por %p59, %p60
      %p63 = scmp.ne.s32.totalorder %s46, %s62
      %p64 = scmp.eq.s32.totalorder %s19, 0
      %p65 = por %p63, %p64
      %s66 = ssub.s32 %s21, %s35
      %p67 = scmp.eq.s32.totalorder %s66, 0
      %s69 = sadd.s32 %s68, 1
      %s70 = scalar_select %p67, %s68, %s69
      %p73 = pneg %p67
      %p74 = scmp.eq.s32.totalorder %s13, 3
      %p75 = por %p73, %p74
      %p76 = scmp.ne.s32.totalorder %s68, %s71
      %p77 = scmp.eq.s32.totalorder %s13, 0
      %p78 = por %p76, %p77
      %p79 = scmp.ne.s32.totalorder %s68, %s71
      %p80 = scmp.eq.s32.totalorder %s18, 3
      %p81 = por %p79, %p80
      %p82 = scmp.ne.s32.totalorder %s71, %s72
      %p83 = scmp.eq.s32.totalorder %s18, 0
      %p84 = por %p82, %p83
      %p85 = scmp.ne.s32.totalorder %s71, %s72
      %p86 = scmp.eq.s32.totalorder %s19, 3
      %p87 = por %p85, %p86
      %p89 = scmp.ne.s32.totalorder %s72, %s88
      %p90 = scmp.eq.s32.totalorder %s19, 0
      %p91 = por %p89, %p90
      %s92 = ssub.s32 %s21, %s35
      %p93 = scmp.eq.s32.totalorder %s92, 0
      %s95 = sadd.s32 %s94, 1
      %s96 = scalar_select %p93, %s94, %s95
      %p99 = pneg %p93
      %p100 = scmp.eq.s32.totalorder %s13, 3
      %p101 = por %p99, %p100
      %p102 = scmp.ne.s32.totalorder %s94, %s97
      %p103 = scmp.eq.s32.totalorder %s13, 0
      %p104 = por %p102, %p103
      %p105 = scmp.ne.s32.totalorder %s94, %s97
      %p106 = scmp.eq.s32.totalorder %s18, 3
      %p107 = por %p105, %p106
      %p108 = scmp.ne.s32.totalorder %s97, %s98
      %p109 = scmp.eq.s32.totalorder %s18, 0
      %p110 = por %p108, %p109
      %p111 = scmp.ne.s32.totalorder %s97, %s98
      %p112 = scmp.eq.s32.totalorder %s19, 3
      %p113 = por %p111, %p112
      %p115 = scmp.ne.s32.totalorder %s98, %s114
      %p116 = scmp.eq.s32.totalorder %s19, 0
      %p117 = por %p115, %p116
      %s118 = ssub.s32 %s20, %s39
      %p119 = scmp.eq.s32.totalorder %s118, 0
      %s121 = sadd.s32 %s120, 1
      %s122 = scalar_select %p119, %s120, %s121
      %p125 = pneg %p119
      %p126 = scmp.eq.s32.totalorder %s13, 3
      %p127 = por %p125, %p126
      %p128 = scmp.ne.s32.totalorder %s120, %s123
      %p129 = scmp.eq.s32.totalorder %s13, 0
      %p130 = por %p128, %p129
      %p131 = scmp.ne.s32.totalorder %s120, %s123
      %p132 = scmp.eq.s32.totalorder %s18, 3
      %p133 = por %p131, %p132
      %p134 = scmp.ne.s32.totalorder %s123, %s124
      %p135 = scmp.eq.s32.totalorder %s18, 0
      %p136 = por %p134, %p135
      %p137 = scmp.ne.s32.totalorder %s123, %s124
      %p138 = scmp.eq.s32.totalorder %s19, 3
      %p139 = por %p137, %p138
      %p141 = scmp.ne.s32.totalorder %s124, %s140
      %p142 = scmp.eq.s32.totalorder %s19, 0
      %p143 = por %p141, %p142
      %s144 = ssub.s32 %s20, %s39
      %s145 = ssub.s32 %s21, %s35
      %s146 = sor.u32 %s144, %s145
      %s147 = ssub.s32 %s22, %s31
      %s148 = sor.u32 %s146, %s147
      %p149 = scmp.eq.s32.totalorder %s148, 0
      %s151 = sadd.s32 %s150, 1
      %s152 = scalar_select %p149, %s150, %s151
      %p155 = pneg %p149
      %p156 = scmp.eq.s32.totalorder %s13, 3
      %p157 = por %p155, %p156
      %p158 = scmp.ne.s32.totalorder %s150, %s153
      %p159 = scmp.eq.s32.totalorder %s13, 0
      %p160 = por %p158, %p159
      %p161 = scmp.ne.s32.totalorder %s150, %s153
      %p162 = scmp.eq.s32.totalorder %s18, 3
      %p163 = por %p161, %p162
      %p164 = scmp.ne.s32.totalorder %s153, %s154
      %p165 = scmp.eq.s32.totalorder %s18, 0
      %p166 = por %p164, %p165
      %p167 = scmp.ne.s32.totalorder %s153, %s154
      %p168 = scmp.eq.s32.totalorder %s19, 3
      %p169 = por %p167, %p168
      %p171 = scmp.ne.s32.totalorder %s154, %s170
      %p172 = scmp.eq.s32.totalorder %s19, 0
      %p173 = por %p171, %p172
      %p174 = scmp.le.s32.totalorder 1, %s13
      %p175 = scmp.lt.s32.totalorder %s13, 5
      %p176 = pnand %p174, %p175
      %p177 = pneg %p176
      // Predicated region
      $region9: #{tpu_custom_call.1} parent=5 // pred_check
        _
      $region10: #{tpu_custom_call.1} parent=5 // pred_check_branch
        %179 = sbr.rel (%p176) target = $region12
      $region11: #{tpu_custom_call.1} parent=5 // pred_region
        %s180 = ssub.s32 %s13, 1
        // Predicated region
        $region13: #{tpu_custom_call.1} parent=11 // pred_check
          %p181 = pneg %p84
        $region14: #{tpu_custom_call.1} parent=11 // pred_check_branch
          %183 = sbr.rel (%p181) target = $region16
        $region15: #{tpu_custom_call.1} parent=11 // pred_region
          %p184 = scmp.lt.s32.totalorder %s24, 0
          %s185 = scalar_select %p184, %s24, 0
          %s186 = smul.addr %s185, 8
          %s187 = scalar_lea.vmem %s1, %s186
        $region16: #{tpu_custom_call.1} parent=11 // pred_fallthru
          _
        // Predicated region
        $region17: #{tpu_custom_call.1} parent=11 // pred_check
          %p188 = pneg %p110
        $region18: #{tpu_custom_call.1} parent=11 // pred_check_branch
          %190 = sbr.rel (%p188) target = $region20
        $region19: #{tpu_custom_call.1} parent=11 // pred_region
          %p191 = scmp.lt.s32.totalorder %s24, 0
          %s192 = scalar_select %p191, %s24, 0
          %s193 = smul.addr %s192, 4
          %s194 = scalar_lea.vmem %s2, %s193
        $region20: #{tpu_custom_call.1} parent=11 // pred_fallthru
          _
      $region12: #{tpu_custom_call.1} parent=5 // pred_fallthru
        _
      %p195 = scmp.lt.s32.totalorder %s13, 4
      // Predicated region
      $region21: #{tpu_custom_call.1} parent=5 // pred_check
        %p196 = pneg %p195
      $region22: #{tpu_custom_call.1} parent=5 // pred_check_branch
        %198 = sbr.rel (%p196) target = $region24
      $region23: #{tpu_custom_call.1} parent=5 // pred_region
        // Predicated region
        $region25: #{tpu_custom_call.1} parent=23 // pred_check
          %p199 = pneg %p52
        $region26: #{tpu_custom_call.1} parent=23 // pred_check_branch
          %201 = sbr.rel (%p199) target = $region28
        $region27: #{tpu_custom_call.1} parent=23 // pred_region
          %p202 = scmp.lt.s32.totalorder %s20, 1
          %s203 = scalar_select %p202, %s20, 1
          %s204 = scalar_lea.vmem %s0, %s203
        $region28: #{tpu_custom_call.1} parent=23 // pred_fallthru
          _
        // Predicated region
        $region29: #{tpu_custom_call.1} parent=23 // pred_check
          %p205 = pneg %p130
        $region30: #{tpu_custom_call.1} parent=23 // pred_check_branch
          %207 = sbr.rel (%p205) target = $region32
        $region31: #{tpu_custom_call.1} parent=23 // pred_region
          %p208 = scmp.lt.s32.totalorder %s20, 1
          %s209 = scalar_select %p208, %s20, 1
          %s210 = smul.addr %s209, 3
          %s211 = smul.addr %s210, 2
          %s212 = scalar_lea.vmem %s3, %s211
        $region32: #{tpu_custom_call.1} parent=23 // pred_fallthru
          _
      $region24: #{tpu_custom_call.1} parent=5 // pred_fallthru
        _
      %p213 = scmp.le.s32.totalorder 1, %s13
      %p214 = scmp.lt.s32.totalorder %s13, 5
      %p215 = pnand %p213, %p214
      %p216 = pneg %p215
      // Predicated region
      $region33: #{tpu_custom_call.1} parent=5 // pred_check
        _
      $region34: #{tpu_custom_call.1} parent=5 // pred_check_branch
        %218 = sbr.rel (%p215) target = $region36
      $region35: #{tpu_custom_call.1} parent=5 // pred_region
        %s219 = ssub.s32 %s13, 1
        %p220 = scmp.lt.s32.totalorder %s23, 1
        %s221 = scalar_select %p220, %s23, 1
        %s222 = scalar_lea.vmem %s0, %s221
        %p223 = pneg %p58
        %p224 = pneg %p55
        %p225 = scmp.lt.s32.totalorder %s24, 0
        %s226 = scalar_select %p225, %s24, 0
        %s227 = smul.addr %s226, 8
        %s228 = scalar_lea.vmem %s1, %s227
        %p229 = pneg %p84
        %p230 = pneg %p81
        %p231 = scmp.lt.s32.totalorder %s24, 0
        %s232 = scalar_select %p231, %s24, 0
        %s233 = smul.addr %s232, 4
        %s234 = scalar_lea.vmem %s2, %s233
        %p235 = pneg %p110
        %p236 = pneg %p107
        %p237 = scmp.lt.s32.totalorder %s23, 1
        %s238 = scalar_select %p237, %s23, 1
        %s239 = smul.addr %s238, 3
        %s240 = smul.addr %s239, 2
        %s241 = scalar_lea.vmem %s3, %s240
        %p242 = pneg %p136
        %p243 = pneg %p133
        %p244 = pneg %p166
        %p245 = pneg %p163
        %s246 = sand.u32 %s153, 1
        %s247 = scalar_lea.sflag [#allocation4], %s246
        %s248 = sand.u32 %s153, 1
        %s249 = smul.addr %s248, 8
        %s250 = scalar_lea.vmem [#allocation3], %s249
        %p251 = scmp.lt.s32.totalorder %s23, 1
        %s252 = scalar_select %p251, %s23, 1
        %s253 = scalar_lea.vmem %s0, %s252
        %p254 = scmp.lt.s32.totalorder %s24, 0
        %s255 = scalar_select %p254, %s24, 0
        %s256 = smul.addr %s255, 8
        %s257 = scalar_lea.vmem %s1, %s256
        %p258 = scmp.lt.s32.totalorder %s24, 0
        %s259 = scalar_select %p258, %s24, 0
        %s260 = smul.addr %s259, 4
        %s261 = scalar_lea.vmem %s2, %s260
        %p262 = scmp.lt.s32.totalorder %s23, 1
        %s263 = scalar_select %p262, %s23, 1
        %s264 = smul.addr %s263, 3
        %s265 = smul.addr %s264, 2
        %s266 = scalar_lea.vmem %s3, %s265
        %p270 = scmp.eq.s32.totalorder %s25, 0
        // Predicated region
        $region37: #{tpu_custom_call.1} parent=35 // pred_check
          %p271 = pneg %p270
        $region38: #{tpu_custom_call.1} parent=35 // pred_check_branch
          %273 = sbr.rel (%p271) target = $region40
        $region39: #{tpu_custom_call.1} parent=35 // pred_region
          %v274 = vld [vmem:[%s253] sm:$0x1]
          %v275 = vld [vmem:[%s261] sm:$0xf]
          %v276 = vld [vmem:[%s261 + $0x4] sm:$0xf]
          %v277 = vld [vmem:[%s261 + $0x8] sm:$0xf]
          %v278 = vld [vmem:[%s261 + $0xc] sm:$0xf]
          %v279 = vld [vmem:[%s261 + $0x10] sm:$0xf]
          %v280 = vld [vmem:[%s261 + $0x14] sm:$0xf]
          %v281 = vld [vmem:[%s261 + $0x18] sm:$0xf]
          %v282 = vld [vmem:[%s261 + $0x1c] sm:$0xf]
          %v283 = vld [vmem:[%s261 + $0x20] sm:$0xf]
          %v284 = vunpack.c.l.bf16 %v275
          %v285 = vunpack.c.l.bf16 %v276
          %v286 = vunpack.c.l.bf16 %v277
          %v287 = vunpack.c.l.bf16 %v278
          %v288 = vunpack.c.l.bf16 %v279
          %v289 = vunpack.c.l.bf16 %v280
          %v290 = vunpack.c.l.bf16 %v281
          %v291 = vunpack.c.l.bf16 %v282
          %v292 = vunpack.c.l.bf16 %v283
          %v294 = vperm.slane %v274, 0
          %v296 = vmul.f32 %v284, %v294
          %v297 = vmul.f32 %v285, %v294
          %v298 = vmul.f32 %v286, %v294
          %v299 = vmul.f32 %v287, %v294
          %v300 = vmul.f32 %v288, %v294
          %v301 = vmul.f32 %v289, %v294
          %v302 = vmul.f32 %v290, %v294
          %v303 = vmul.f32 %v291, %v294
          %v304 = vmul.f32 %v292, %v294
          %v305 = vld [vmem:[%s257] sm:$0xff]
          %v306 = vmul.f32 %v274, %v274
          %v308 = vperm.slane %v306, 0
          %v310 = vmul.f32 %v305, %v308
          %vm311 = vcmask 31744
          %v312 = vsel %vm311, %v310, 0.0
          %313 = vadd.xlane.f32.xlu0 %v312
          %v314 = vpop.xlane.xlu0 %313
          %v315 = vadd.f32 %v314, 1e-08
          %v316 = vrsqrt.pop %v315
          %v317 = vmul.f32 %v316, %v315
          %v318 = vmul.f32 %v317, %v316
          %v319 = vmul.f32 0.5, %v318
          %v320 = vsub.f32 1.5, %v319
          %v321 = vmul.f32 %v316, %v320
          %vm322 = vweird.f32 %v315
          %vm323 = vweird.f32 %v316
          %vm324 = vmor %vm322, %vm323
          %v325 = vsel %vm324, %v316, %v321
          %v326 = vmul.f32 %v296, %v325
          %v327 = vmul.f32 %v297, %v325
          %v328 = vmul.f32 %v298, %v325
          %v329 = vmul.f32 %v299, %v325
          %v330 = vmul.f32 %v300, %v325
          %v331 = vmul.f32 %v301, %v325
          %v332 = vmul.f32 %v302, %v325
          %v333 = vmul.f32 %v303, %v325
          %v334 = vmul.f32 %v304, %v325
          %v335 = vpack.c.bf16 %v326, %v326
          %v336 = vpack.c.bf16 %v327, %v327
          %v337 = vpack.c.bf16 %v328, %v328
          %v338 = vpack.c.bf16 %v329, %v329
          %v339 = vpack.c.bf16 %v330, %v330
          %v340 = vpack.c.bf16 %v331, %v331
          %v341 = vpack.c.bf16 %v332, %v332
          %v342 = vpack.c.bf16 %v333, %v333
          %v343 = vpack.c.bf16 %v334, %v334
          %vm344 = vcmask 27648
          %345 = vst.msk [vmem:[#allocation2] sm:$0xf] %vm344, %v335
          %346 = vst.msk [vmem:[#allocation2 + $0x4] sm:$0xf] %vm344, %v336
          %347 = vst.msk [vmem:[#allocation2 + $0x8] sm:$0xf] %vm344, %v337
          %348 = vst.msk [vmem:[#allocation2 + $0xc] sm:$0xf] %vm344, %v338
          %349 = vst.msk [vmem:[#allocation2 + $0x10] sm:$0xf] %vm344, %v339
          %350 = vst.msk [vmem:[#allocation2 + $0x14] sm:$0xf] %vm344, %v340
          %351 = vst.msk [vmem:[#allocation2 + $0x18] sm:$0xf] %vm344, %v341
          %352 = vst.msk [vmem:[#allocation2 + $0x1c] sm:$0xf] %vm344, %v342
          %353 = vst.msk [vmem:[#allocation2 + $0x20] sm:$0xf] %vm344, %v343
        $region40: #{tpu_custom_call.1} parent=35 // pred_fallthru
          _
        %s354 = smul.u32 %s25, 128
        %s355 = sshra.s32 %s354, 7
        %s356 = sand.u32 %s354, 127
        %s357 = smul.addr %s355, 2
        %s358 = scalar_lea.vmem %s266, %s357
        %v359 = vld [vmem:[%s358] sm:$0xf]
        %v360 = vlaneseq
        %v361 = vand.u32 %v360, 127
        %v362 = vstv %s354
        %v363 = vadd.s32 %v362, %v361
        %vm364 = vcmp.lt.s32.totalorder %v363, 0
        %v365 = vsub.s32 0, %v363
        %v366 = vsel %vm364, %v365, %v363
        %v367 = vshrl.u32 %v366, 4
        %v368 = vand.u32 %v366, 15
        %v369 = vsub.s32 0, %v368
        %v370 = vsel %vm364, %v369, %v368
        %vm371 = vcmp.ne.s32.totalorder %v370, 0
        %vm372 = vcmp.lt.s32.totalorder %v370, 0
        %vm373 = vmand %vm372, %vm371
        %v374 = vadd.s32 %v370, 16
        %v375 = vsel %vm373, %v374, %v370
        %vm376 = vcmp.ge.s32.totalorder %v375, 1
        %vm377 = vcmp.lt.s32.totalorder %v375, 16
        %vm378 = vmand %vm376, %vm377
        %vm379 = vcmp.ge.s32.totalorder %v375, 0
        %vm380 = vcmp.lt.s32.totalorder %v375, 15
        %vm381 = vmand %vm379, %vm380
        %v382 = vsel %vm378, 1, 0
        %vm383 = vcmp.eq.s32.totalorder %v382, 1
        %v384 = vsel %vm383, 1, 0
        %v385 = vpack.c.b16 %v384, %v384
        %v386 = vunpack.c.l.b16 %v385
        %v387 = vunpack.c.h.b16 %v385
        %v388 = vunpack.c.l.b16 0
        %v389 = vunpack.c.h.b16 0
        %vm390 = vcmp.ne.s32.totalorder %v386, %v388
        %vm391 = vcmp.ne.s32.totalorder %v387, %v389
        %vm392 = vmpackc.low %vm391, %vm390
        %v393 = vsel %vm392, %v359, 0
        %v394 = vld [vmem:[#allocation2] sm:$0xf]
        %s395 = scalar_lea.vmem [#allocation2], 4
        %v396 = vld [vmem:[%s395] sm:$0xf]
        %398 = vst [vmem:[#allocation1] ss:$4 sm:$0xff] %v359
        %v399 = vld.sshfl [vmem:[#allocation1] sm:$0xff pattern:$0x73625140]
        %v401 = vld.sshfl [vmem:[#allocation1 + $0x8] sm:$0xff pattern:$0x73625140]
        %403 = vrot.lane.b32.xlu0 %v399, 127
        %v404 = vpop.permute.xlu0 %403
        %405 = vrot.lane.b32.xlu0 %v401, 127
        %v406 = vpop.permute.xlu0 %405
        %vm407 = vcmask 1039360
        %v408 = vsel %vm407, %v404, %v406
        %vm409 = vcmask 31744
        %v411 = vsel %vm409, %v396, 0
        %vm413 = vcmask 1041408
        %v415 = vsel %vm413, %v408, 0
        %417 = vmatpush.bf16.msra.mxu0 0
        %418 = vmatpush.bf16.msra.mxu0 0
        %419 = vmatpush.bf16.msra.mxu0 0
        %420 = vmatpush.bf16.msra.mxu0 0
        %421 = vmatpush.bf16.msra.mxu0 0
        %422 = vmatpush.bf16.msra.mxu0 0
        %423 = vmatpush.bf16.msra.mxu0 0
        %424 = vmatpush.bf16.msra.mxu0 %v415
        %425 = vmatmul.bf16.gmra.mxu0 %v411
        %v426 = vpop.f32.mrf.mxu0
        %v427 = vadd.f32 0.0, %v426
        %v428 = vpop.f32.mrf.mxu0
        %429 = vdwg.mxu0
        %v431 = vsel %vm409, %v394, 0
        %v434 = vsel %vm413, %v393, 0
        %436 = vmatpush.bf16.msra.mxu0 0
        %437 = vmatpush.bf16.msra.mxu0 0
        %438 = vmatpush.bf16.msra.mxu0 0
        %439 = vmatpush.bf16.msra.mxu0 0
        %440 = vmatpush.bf16.msra.mxu0 0
        %441 = vmatpush.bf16.msra.mxu0 0
        %442 = vmatpush.bf16.msra.mxu0 0
        %443 = vmatpush.bf16.msra.mxu0 %v434
        %444 = vmatmul.bf16.gmra.mxu0 %v431
        %v445 = vpop.f32.mrf.mxu0
        %v446 = vadd.f32 %v427, %v445
        %v447 = vpop.f32.mrf.mxu0
        %448 = vdwg.mxu0
        %v449 = vsel %vm381, 1, 0
        %vm450 = vcmp.eq.s32.totalorder %v449, 1
        %v451 = vsel %vm450, 1, 0
        %v452 = vpack.c.b16 %v451, %v451
        %v453 = vunpack.c.l.b16 %v452
        %v454 = vunpack.c.h.b16 %v452
        %v455 = vunpack.c.l.b16 0
        %v456 = vunpack.c.h.b16 0
        %vm457 = vcmp.ne.s32.totalorder %v453, %v455
        %vm458 = vcmp.ne.s32.totalorder %v454, %v456
        %vm459 = vmpackc.low %vm458, %vm457
        %v460 = vsel %vm459, 65537, 0
        %461 = vrot.lane.b32.xlu0 %v460, 2
        %v462 = vpop.permute.xlu0 %461
        %v463 = vrot.slane %v462, 6
        %vm464 = vcmask 15360
        %v465 = vsel %vm464, %v463, %v462
        %v466 = vunpack.c.l.b16 %v465
        %v467 = vunpack.c.h.b16 %v465
        %v468 = vunpack.c.l.b16 0
        %v469 = vunpack.c.h.b16 0
        %vm470 = vcmp.ne.s32.totalorder %v466, %v468
        %vm471 = vcmp.ne.s32.totalorder %v467, %v469
        %vm472 = vmpackc.low %vm471, %vm470
        %v473 = vsel %vm472, %v359, 0
        %s474 = scalar_lea.vmem [#allocation2], 8
        %v475 = vld [vmem:[%s474] sm:$0xf]
        %477 = vst [vmem:[#allocation1] ss:$4 sm:$0xff] %v473
        %v478 = vld.sshfl [vmem:[#allocation1] sm:$0xff pattern:$0x73625140]
        %v480 = vld.sshfl [vmem:[#allocation1 + $0x8] sm:$0xff pattern:$0x73625140]
        %482 = vrot.lane.b32.xlu0 %v478, 126
        %v483 = vpop.permute.xlu0 %482
        %484 = vrot.lane.b32.xlu0 %v480, 126
        %v485 = vpop.permute.xlu0 %484
        %vm486 = vcmask 1031168
        %v487 = vsel %vm486, %v483, %v485
        %v489 = vsel %vm409, %v475, 0
        %v492 = vsel %vm413, %v487, 0
        %494 = vmatpush.bf16.msra.mxu0 0
        %495 = vmatpush.bf16.msra.mxu0 0
        %496 = vmatpush.bf16.msra.mxu0 0
        %497 = vmatpush.bf16.msra.mxu0 0
        %498 = vmatpush.bf16.msra.mxu0 0
        %499 = vmatpush.bf16.msra.mxu0 0
        %500 = vmatpush.bf16.msra.mxu0 0
        %501 = vmatpush.bf16.msra.mxu0 %v492
        %502 = vmatmul.bf16.gmra.mxu0 %v489
        %v503 = vpop.f32.mrf.mxu0
        %v504 = vadd.f32 0.0, %v503
        %v505 = vpop.f32.mrf.mxu0
        %506 = vdwg.mxu0
        %v507 = vadd.f32 %v446, %v504
        %v508 = vsel %vm392, 65537, 0
        %509 = vrot.lane.b32.xlu0 %v508, 16
        %v510 = vpop.permute.xlu0 %509
        %v511 = vrot.slane %v510, 6
        %vm512 = vcmask 130048
        %v513 = vsel %vm512, %v511, %v510
        %v514 = vunpack.c.l.b16 %v513
        %v515 = vunpack.c.h.b16 %v513
        %v516 = vunpack.c.l.b16 0
        %v517 = vunpack.c.h.b16 0
        %vm518 = vcmp.ne.s32.totalorder %v514, %v516
        %vm519 = vcmp.ne.s32.totalorder %v515, %v517
        %vm520 = vmpackc.low %vm519, %vm518
        %v521 = vsel %vm520, %v359, 0
        %s522 = scalar_lea.vmem [#allocation2], 12
        %v523 = vld [vmem:[%s522] sm:$0xf]
        %525 = vst [vmem:[#allocation1] ss:$4 sm:$0xff] %v521
        %v526 = vld.sshfl [vmem:[#allocation1] sm:$0xff pattern:$0x73625140]
        %v528 = vld.sshfl [vmem:[#allocation1 + $0x8] sm:$0xff pattern:$0x73625140]
        %530 = vrot.lane.b32.xlu0 %v526, 112
        %v531 = vpop.permute.xlu0 %530
        %532 = vrot.lane.b32.xlu0 %v528, 112
        %v533 = vpop.permute.xlu0 %532
        %vm534 = vcmask 916480
        %v535 = vsel %vm534, %v531, %v533
        %v537 = vsel %vm409, %v523, 0
        %v540 = vsel %vm413, %v535, 0
        %542 = vmatpush.bf16.msra.mxu0 0
        %543 = vmatpush.bf16.msra.mxu0 0
        %544 = vmatpush.bf16.msra.mxu0 0
        %545 = vmatpush.bf16.msra.mxu0 0
        %546 = vmatpush.bf16.msra.mxu0 0
        %547 = vmatpush.bf16.msra.mxu0 0
        %548 = vmatpush.bf16.msra.mxu0 0
        %549 = vmatpush.bf16.msra.mxu0 %v540
        %550 = vmatmul.bf16.gmra.mxu0 %v537
        %v551 = vpop.f32.mrf.mxu0
        %v552 = vadd.f32 0.0, %v551
        %v553 = vpop.f32.mrf.mxu0
        %554 = vdwg.mxu0
        %v555 = vadd.f32 %v507, %v552
        %s556 = scalar_lea.vmem [#allocation2], 16
        %v557 = vld [vmem:[%s556] sm:$0xf]
        %558 = vst [vmem:[#allocation1] ss:$4 sm:$0xff] %v359
        %v559 = vld.sshfl [vmem:[#allocation1] sm:$0xff pattern:$0x73625140]
        %v561 = vld.sshfl [vmem:[#allocation1 + $0x8] sm:$0xff pattern:$0x73625140]
        %563 = vrot.lane.b32.xlu0 %v559, 111
        %v564 = vpop.permute.xlu0 %563
        %565 = vrot.lane.b32.xlu0 %v561, 111
        %v566 = vpop.permute.xlu0 %565
        %vm567 = vcmask 908288
        %v568 = vsel %vm567, %v564, %v566
        %v570 = vsel %vm409, %v557, 0
        %v573 = vsel %vm413, %v568, 0
        %575 = vmatpush.bf16.msra.mxu0 0
        %576 = vmatpush.bf16.msra.mxu0 0
        %577 = vmatpush.bf16.msra.mxu0 0
        %578 = vmatpush.bf16.msra.mxu0 0
        %579 = vmatpush.bf16.msra.mxu0 0
        %580 = vmatpush.bf16.msra.mxu0 0
        %581 = vmatpush.bf16.msra.mxu0 0
        %582 = vmatpush.bf16.msra.mxu0 %v573
        %583 = vmatmul.bf16.gmra.mxu0 %v570
        %v584 = vpop.f32.mrf.mxu0
        %v585 = vadd.f32 0.0, %v584
        %v586 = vpop.f32.mrf.mxu0
        %587 = vdwg.mxu0
        %v588 = vadd.f32 %v555, %v585
        %589 = vrot.lane.b32.xlu0 %v460, 18
        %v590 = vpop.permute.xlu0 %589
        %v591 = vrot.slane %v590, 6
        %vm592 = vcmask 146432
        %v593 = vsel %vm592, %v591, %v590
        %v594 = vunpack.c.l.b16 %v593
        %v595 = vunpack.c.h.b16 %v593
        %v596 = vunpack.c.l.b16 0
        %v597 = vunpack.c.h.b16 0
        %vm598 = vcmp.ne.s32.totalorder %v594, %v596
        %vm599 = vcmp.ne.s32.totalorder %v595, %v597
        %vm600 = vmpackc.low %vm599, %vm598
        %v601 = vsel %vm600, %v359, 0
        %s602 = scalar_lea.vmem [#allocation2], 20
        %v603 = vld [vmem:[%s602] sm:$0xf]
        %605 = vst [vmem:[#allocation1] ss:$4 sm:$0xff] %v601
        %v606 = vld.sshfl [vmem:[#allocation1] sm:$0xff pattern:$0x73625140]
        %v608 = vld.sshfl [vmem:[#allocation1 + $0x8] sm:$0xff pattern:$0x73625140]
        %610 = vrot.lane.b32.xlu0 %v606, 110
        %v611 = vpop.permute.xlu0 %610
        %612 = vrot.lane.b32.xlu0 %v608, 110
        %v613 = vpop.permute.xlu0 %612
        %vm614 = vcmask 900096
        %v615 = vsel %vm614, %v611, %v613
        %v617 = vsel %vm409, %v603, 0
        %v620 = vsel %vm413, %v615, 0
        %622 = vmatpush.bf16.msra.mxu0 0
        %623 = vmatpush.bf16.msra.mxu0 0
        %624 = vmatpush.bf16.msra.mxu0 0
        %625 = vmatpush.bf16.msra.mxu0 0
        %626 = vmatpush.bf16.msra.mxu0 0
        %627 = vmatpush.bf16.msra.mxu0 0
        %628 = vmatpush.bf16.msra.mxu0 0
        %629 = vmatpush.bf16.msra.mxu0 %v620
        %630 = vmatmul.bf16.gmra.mxu0 %v617
        %v631 = vpop.f32.mrf.mxu0
        %v632 = vadd.f32 0.0, %v631
        %v633 = vpop.f32.mrf.mxu0
        %634 = vdwg.mxu0
        %v635 = vadd.f32 %v588, %v632
        %636 = vrot.lane.b32.xlu0 %v508, 32
        %v637 = vpop.permute.xlu0 %636
        %v638 = vrot.slane %v637, 6
        %vm639 = vcmask 261120
        %v640 = vsel %vm639, %v638, %v637
        %v641 = vunpack.c.l.b16 %v640
        %v642 = vunpack.c.h.b16 %v640
        %v643 = vunpack.c.l.b16 0
        %v644 = vunpack.c.h.b16 0
        %vm645 = vcmp.ne.s32.totalorder %v641, %v643
        %vm646 = vcmp.ne.s32.totalorder %v642, %v644
        %vm647 = vmpackc.low %vm646, %vm645
        %v648 = vsel %vm647, %v359, 0
        %s649 = scalar_lea.vmem [#allocation2], 24
        %v650 = vld [vmem:[%s649] sm:$0xf]
        %652 = vst [vmem:[#allocation1] ss:$4 sm:$0xff] %v648
        %v653 = vld.sshfl [vmem:[#allocation1] sm:$0xff pattern:$0x73625140]
        %v655 = vld.sshfl [vmem:[#allocation1 + $0x8] sm:$0xff pattern:$0x73625140]
        %657 = vrot.lane.b32.xlu0 %v653, 96
        %v658 = vpop.permute.xlu0 %657
        %659 = vrot.lane.b32.xlu0 %v655, 96
        %v660 = vpop.permute.xlu0 %659
        %vm661 = vcmask 785408
        %v662 = vsel %vm661, %v658, %v660
        %v664 = vsel %vm409, %v650, 0
        %v667 = vsel %vm413, %v662, 0
        %669 = vmatpush.bf16.msra.mxu0 0
        %670 = vmatpush.bf16.msra.mxu0 0
        %671 = vmatpush.bf16.msra.mxu0 0
        %672 = vmatpush.bf16.msra.mxu0 0
        %673 = vmatpush.bf16.msra.mxu0 0
        %674 = vmatpush.bf16.msra.mxu0 0
        %675 = vmatpush.bf16.msra.mxu0 0
        %676 = vmatpush.bf16.msra.mxu0 %v667
        %677 = vmatmul.bf16.gmra.mxu0 %v664
        %v678 = vpop.f32.mrf.mxu0
        %v679 = vadd.f32 0.0, %v678
        %v680 = vpop.f32.mrf.mxu0
        %681 = vdwg.mxu0
        %v682 = vadd.f32 %v635, %v679
        %s683 = scalar_lea.vmem [#allocation2], 28
        %v684 = vld [vmem:[%s683] sm:$0xf]
        %685 = vst [vmem:[#allocation1] ss:$4 sm:$0xff] %v359
        %v686 = vld.sshfl [vmem:[#allocation1] sm:$0xff pattern:$0x73625140]
        %v688 = vld.sshfl [vmem:[#allocation1 + $0x8] sm:$0xff pattern:$0x73625140]
        %690 = vrot.lane.b32.xlu0 %v686, 95
        %v691 = vpop.permute.xlu0 %690
        %692 = vrot.lane.b32.xlu0 %v688, 95
        %v693 = vpop.permute.xlu0 %692
        %vm694 = vcmask 777216
        %v695 = vsel %vm694, %v691, %v693
        %v697 = vsel %vm409, %v684, 0
        %v700 = vsel %vm413, %v695, 0
        %702 = vmatpush.bf16.msra.mxu0 0
        %703 = vmatpush.bf16.msra.mxu0 0
        %704 = vmatpush.bf16.msra.mxu0 0
        %705 = vmatpush.bf16.msra.mxu0 0
        %706 = vmatpush.bf16.msra.mxu0 0
        %707 = vmatpush.bf16.msra.mxu0 0
        %708 = vmatpush.bf16.msra.mxu0 0
        %709 = vmatpush.bf16.msra.mxu0 %v700
        %710 = vmatmul.bf16.gmra.mxu0 %v697
        %v711 = vpop.f32.mrf.mxu0
        %v712 = vadd.f32 0.0, %v711
        %v713 = vpop.f32.mrf.mxu0
        %714 = vdwg.mxu0
        %v715 = vadd.f32 %v682, %v712
        %716 = vrot.lane.b32.xlu0 %v460, 34
        %v717 = vpop.permute.xlu0 %716
        %v718 = vrot.slane %v717, 6
        %vm719 = vcmask 277504
        %v720 = vsel %vm719, %v718, %v717
        %v721 = vunpack.c.l.b16 %v720
        %v722 = vunpack.c.h.b16 %v720
        %v723 = vunpack.c.l.b16 0
        %v724 = vunpack.c.h.b16 0
        %vm725 = vcmp.ne.s32.totalorder %v721, %v723
        %vm726 = vcmp.ne.s32.totalorder %v722, %v724
        %vm727 = vmpackc.low %vm726, %vm725
        %v728 = vsel %vm727, %v359, 0
        %s729 = scalar_lea.vmem [#allocation2], 32
        %v730 = vld [vmem:[%s729] sm:$0xf]
        %732 = vst [vmem:[#allocation1] ss:$4 sm:$0xff] %v728
        %v733 = vld.sshfl [vmem:[#allocation1] sm:$0xff pattern:$0x73625140]
        %v735 = vld.sshfl [vmem:[#allocation1 + $0x8] sm:$0xff pattern:$0x73625140]
        %737 = vrot.lane.b32.xlu0 %v733, 94
        %v738 = vpop.permute.xlu0 %737
        %739 = vrot.lane.b32.xlu0 %v735, 94
        %v740 = vpop.permute.xlu0 %739
        %vm741 = vcmask 769024
        %v742 = vsel %vm741, %v738, %v740
        %v744 = vsel %vm409, %v730, 0
        %v747 = vsel %vm413, %v742, 0
        %749 = vmatpush.bf16.msra.mxu0 0
        %750 = vmatpush.bf16.msra.mxu0 0
        %751 = vmatpush.bf16.msra.mxu0 0
        %752 = vmatpush.bf16.msra.mxu0 0
        %753 = vmatpush.bf16.msra.mxu0 0
        %754 = vmatpush.bf16.msra.mxu0 0
        %755 = vmatpush.bf16.msra.mxu0 0
        %756 = vmatpush.bf16.msra.mxu0 %v747
        %757 = vmatmul.bf16.gmra.mxu0 %v744
        %v758 = vpop.f32.mrf.mxu0
        %v759 = vadd.f32 0.0, %v758
        %v760 = vpop.f32.mrf.mxu0
        %761 = vdwg.mxu0
        %v762 = vadd.f32 %v715, %v759
        %763 = vst [vmem:[%s250] sm:$0xff] %v762
        %s764 = sand.u32 %s153, 1
        %s765 = scalar_lea.sflag [#allocation4], %s764
        %s766 = sand.u32 %s153, 1
        %s767 = smul.addr %s766, 8
        %s768 = scalar_lea.vmem [#allocation3], %s767
        // Predicated region
        $region41: #{tpu_custom_call.1} parent=35 // pred_check
          %p769 = pneg %p163
        $region42: #{tpu_custom_call.1} parent=35 // pred_check_branch
          %771 = sbr.rel (%p769) target = $region44
        $region43: #{tpu_custom_call.1} parent=35 // pred_region
          %773 = vsyncadd %s765, 0
          %s774 = smul.addr %s24, 2
          %s775 = sadd.s32 %s25, %s774
          %s776 = smul.addr %s23, 2
          %s777 = sadd.s32 %s775, %s776
          %s778 = smul.addr %s777, 8
          %s779 = scalar_lea.hbm %s4, %s778
          %s781 = sshll.u32 %s768, 4
          %s782 = int_to_ptr.vmem [resolvable:$true] %s781
          %s783 = sshll.u32 %s779, 4
          %s784 = int_to_ptr.hbm [resolvable:$true] %s783
          %786 = dma.vmem_to_hbm [thread:$0]  %s782, 128, %s784, %s765
        $region44: #{tpu_custom_call.1} parent=35 // pred_fallthru
          _
      $region36: #{tpu_custom_call.1} parent=5 // pred_fallthru
        _
      %p787 = scmp.le.s32.totalorder 2, %s13
      // Predicated region
      $region45: #{tpu_custom_call.1} parent=5 // pred_check
        %p788 = pneg %p787
      $region46: #{tpu_custom_call.1} parent=5 // pred_check_branch
        %790 = sbr.rel (%p788) target = $region48
      $region47: #{tpu_custom_call.1} parent=5 // pred_region
        %s791 = ssub.s32 %s13, 2
        // Predicated region
        $region49: #{tpu_custom_call.1} parent=47 // pred_check
          %p792 = pneg %p169
        $region50: #{tpu_custom_call.1} parent=47 // pred_check_branch
          %794 = sbr.rel (%p792) target = $region52
        $region51: #{tpu_custom_call.1} parent=47 // pred_region
          %s795 = sand.u32 %s154, 1
          %s796 = scalar_lea.sflag [#allocation4], %s795
          %s797 = sand.u32 %s154, 1
          %s798 = smul.addr %s797, 8
          %s799 = scalar_lea.vmem [#allocation3], %s798
          %801 = dma.done %s796, 128
        $region52: #{tpu_custom_call.1} parent=47 // pred_fallthru
          _
      $region48: #{tpu_custom_call.1} parent=5 // pred_fallthru
        _
    $region6: #{tpu_custom_call.1} parent=1 // loop_footer
      %s17 = sadd.s32 1, %s13
    $region7: #{tpu_custom_call.1} parent=1 // loop_footer_branch
      %12 = sbr.rel target = $region3
    $region8: #{tpu_custom_call.1} parent=1 // loop_exit
      _
    %802 = vsyncpa [#allocation4], 1
    %s803 = scalar_lea.sflag [#allocation4], 1
    %804 = vsyncpa %s803, 1

</llo_original>
